<compile_context>
chip_gen: v7x
topology: tpu7x:2x2x1
jax: 0.10.0
libtpu: 0.0.40
codegen_flags: <defaults>
</compile_context>

<pallas_src>
import functools

import jax
import jax.numpy as jnp
from jax.experimental import pallas as pl
from jax.experimental.pallas import tpu as pltpu

LANES = 128
SUBLANES = 8
MAX_TILE_ROWS = 4096          # 4096 x 128 f32 = 2 MiB per input block
NUM_SPLITS = 2                # leading "parallel" axis (one per v7x TensorCore)
VMEM_LIMIT_BYTES = 32 * 1024 * 1024


def _round_up(x, m):
    return (x + m - 1) // m * m


def _dice_kernel(x_ref, t_ref, inter_out, a_out, b_out,
                 inter_acc, a_acc, b_acc,
                 *, valid_rows, tile_rows, tiles_per_split, need_mask):
    c = pl.program_id(0)   # split index (parallel)
    k = pl.program_id(1)   # reduction step within the split (arbitrary)

    @pl.when(k == 0)
    def _():
        inter_acc[...] = jnp.zeros_like(inter_acc)
        a_acc[...] = jnp.zeros_like(a_acc)
        b_acc[...] = jnp.zeros_like(b_acc)

    # Cast to f32 for compute only (DMA/storage stays in the input dtype).
    x = x_ref[...].astype(jnp.float32)
    t = t_ref[...].astype(jnp.float32)

    if tile_rows % SUBLANES == 0:
        # (8,128) sublane-shaped partials: plain unmasked vreg adds in the hot
        # loop; no per-step cross-sublane (XLU) reduce, no masked (1,128) store.
        def _accum(xv, tv):
            x3 = xv.reshape(tile_rows // SUBLANES, SUBLANES, LANES)
            t3 = tv.reshape(tile_rows // SUBLANES, SUBLANES, LANES)
            inter_acc[...] += jnp.sum(x3 * t3, axis=0)
            a_acc[...] += jnp.sum(x3 * x3, axis=0)
            b_acc[...] += jnp.sum(t3 * t3, axis=0)
    else:
        # Small-input fallback (tile_rows == rows < 8*MAX_TILE_ROWS, not %8==0).
        def _accum(xv, tv):
            inter_acc[0:1, :] += jnp.sum(xv * tv, axis=0, keepdims=True)
            a_acc[0:1, :] += jnp.sum(xv * xv, axis=0, keepdims=True)
            b_acc[0:1, :] += jnp.sum(tv * tv, axis=0, keepdims=True)

    if need_mask:
        tile_start = (c * tiles_per_split + k) * tile_rows
        is_full = tile_start + tile_rows <= valid_rows

        @pl.when(is_full)
        def _():                      # fast path: no mask arithmetic
            _accum(x, t)

        @pl.when(jnp.logical_not(is_full))
        def _():                      # ragged last tile / clamped phantom tile
            row_ids = jax.lax.broadcasted_iota(jnp.int32, (tile_rows, LANES), 0)
            mask = (tile_start + row_ids) < valid_rows
            _accum(jnp.where(mask, x, 0.0), jnp.where(mask, t, 0.0))
    else:
        _accum(x, t)

    @pl.when(k == pl.num_programs(1) - 1)
    def _():
        inter_out[...] = inter_acc[...]
        a_out[...] = a_acc[...]
        b_out[...] = b_acc[...]


@jax.jit
def dice_loss(x, target):
    """Compute DiceLoss(x, target) with a Pallas TPU kernel. Returns f32 scalar."""
    xf = jnp.ravel(x)
    tf = jnp.ravel(target)
    n = xf.shape[0]

    # Minimal zero-pad to the next multiple of 128 so the flat vector can be
    # viewed as (rows, 128).  Zero padding is exact for all three sums; no pad
    # when n is lane-aligned (the common case).  Under jit the ravel/pad/
    # reshape fuse into a single producer for the kernel input.
    n128 = _round_up(n, LANES)
    if n128 != n:
        xf = jnp.pad(xf, (0, n128 - n))
        tf = jnp.pad(tf, (0, n128 - n))
    rows = n128 // LANES

    x2d = xf.reshape(rows, LANES)
    t2d = tf.reshape(rows, LANES)

    tile_rows = min(MAX_TILE_ROWS, rows)
    total_tiles = pl.cdiv(rows, tile_rows)
    num_splits = min(NUM_SPLITS, total_tiles)
    tiles_per_split = pl.cdiv(total_tiles, num_splits)
    # Any tile (ragged last real tile, or clamped phantom tile of the second
    # split) that overruns the valid row range needs in-kernel masking.
    need_mask = (num_splits * tiles_per_split * tile_rows) != rows
    last_block = total_tiles - 1

    def in_map(c, k):
        # Clamp so phantom tiles re-read the last real block (fully masked).
        return (jnp.minimum(c * tiles_per_split + k, last_block), 0)

    kernel = functools.partial(
        _dice_kernel,
        valid_rows=rows,
        tile_rows=tile_rows,
        tiles_per_split=tiles_per_split,
        need_mask=need_mask,
    )

    part_shape = jax.ShapeDtypeStruct((num_splits * SUBLANES, LANES), jnp.float32)
    part_spec = pl.BlockSpec((SUBLANES, LANES), lambda c, k: (c, 0))

    bytes_accessed = int(x2d.size * x2d.dtype.itemsize
                         + t2d.size * t2d.dtype.itemsize
                         + 3 * num_splits * SUBLANES * LANES * 4)

    inter_p, a_p, b_p = pl.pallas_call(
        kernel,
        out_shape=(part_shape, part_shape, part_shape),
        grid_spec=pltpu.PrefetchScalarGridSpec(
            num_scalar_prefetch=0,
            grid=(num_splits, tiles_per_split),
            in_specs=[
                pl.BlockSpec((tile_rows, LANES), in_map),
                pl.BlockSpec((tile_rows, LANES), in_map),
            ],
            out_specs=[part_spec, part_spec, part_spec],
            scratch_shapes=[
                pltpu.VMEM((SUBLANES, LANES), jnp.float32),
                pltpu.VMEM((SUBLANES, LANES), jnp.float32),
                pltpu.VMEM((SUBLANES, LANES), jnp.float32),
            ],
        ),
        compiler_params=pltpu.CompilerParams(
            dimension_semantics=("parallel", "arbitrary"),
            vmem_limit_bytes=VMEM_LIMIT_BYTES,
        ),
        cost_estimate=pl.CostEstimate(
            flops=6 * int(n),
            transcendentals=0,
            bytes_accessed=bytes_accessed,
        ),
    )(x2d, t2d)

    # Cross-split / cross-lane combine and the final scalar math in the wrapper
    # (fuses with the jit; tiny compared to the kernel's HBM traffic).
    smooth = jnp.float32(1.0)
    inter = jnp.sum(inter_p)
    a = jnp.sum(a_p)
    b = jnp.sum(b_p)
    return 1.0 - (2.0 * inter + smooth) / (a + b + smooth)


def _ref_dice_loss(x, target):
    xf = jnp.ravel(x).astype(jnp.float32)
    tf = jnp.ravel(target).astype(jnp.float32)
    inter = jnp.sum(xf * tf)
    a = jnp.sum(xf * xf)
    b = jnp.sum(tf * tf)
    return 1.0 - (2.0 * inter + 1.0) / (a + b + 1.0)


if __name__ == "__main__":
    key = jax.random.PRNGKey(0)

    # 1) Typical aligned NCHW shape: single tile, single split, no masking.
    kx, kt, key = jax.random.split(key, 3)
    x = jax.nn.sigmoid(jax.random.normal(kx, (2, 4, 16, 16), dtype=jnp.float32))
    t = (jax.random.uniform(kt, (2, 4, 16, 16)) > 0.5).astype(jnp.float32)
    loss = dice_loss(x, t)
    jax.block_until_ready(loss)
    ref = _ref_dice_loss(x, t)
    assert jnp.allclose(loss, ref, atol=1e-5, rtol=1e-5), (loss, ref)

    # 2) Non-128-aligned small input: exercises the element pad and the
    #    non-multiple-of-8 row-tile accumulation fallback.
    kx2, kt2, key = jax.random.split(key, 3)
    x2 = jax.nn.sigmoid(jax.random.normal(kx2, (5, 3, 99, 101), dtype=jnp.float32))
    t2 = (jax.random.uniform(kt2, (5, 3, 99, 101)) > 0.5).astype(jnp.float32)
    loss2 = dice_loss(x2, t2)
    jax.block_until_ready(loss2)
    ref2 = _ref_dice_loss(x2, t2)
    assert jnp.allclose(loss2, ref2, atol=1e-5, rtol=1e-5), (loss2, ref2)

    # 3) Larger non-aligned input: multi-tile reduction, 2-way split, ragged
    #    last real tile and a clamped+masked phantom tile on the second split.
    kx3, kt3, key = jax.random.split(key, 3)
    x3 = jax.nn.sigmoid(jax.random.normal(kx3, (3, 5, 240, 301), dtype=jnp.float32))
    t3 = (jax.random.uniform(kt3, (3, 5, 240, 301)) > 0.5).astype(jnp.float32)
    loss3 = dice_loss(x3, t3)
    jax.block_until_ready(loss3)
    ref3 = _ref_dice_loss(x3, t3)
    assert jnp.allclose(loss3, ref3, atol=1e-5, rtol=1e-5), (loss3, ref3)

    print("KERNEL_OK")
</pallas_src>

<mosaic_0001>
module attributes {stable_mosaic.version = 11 : i64} {
  func.func @_dice_kernel(%arg0: i32, %arg1: i32, %arg2: memref<16x128xf32, #tpu.memory_space<vmem>>, %arg3: memref<16x128xf32, #tpu.memory_space<vmem>>, %arg4: memref<8x128xf32, #tpu.memory_space<vmem>>, %arg5: memref<8x128xf32, #tpu.memory_space<vmem>>, %arg6: memref<8x128xf32, #tpu.memory_space<vmem>>, %arg7: memref<8x128xf32, #tpu.memory_space<vmem>>, %arg8: memref<8x128xf32, #tpu.memory_space<vmem>>, %arg9: memref<8x128xf32, #tpu.memory_space<vmem>>) attributes {dimension_semantics = [#tpu.dimension_semantics<parallel>, #tpu.dimension_semantics<arbitrary>], iteration_bounds = array<i64: 1, 1>, scalar_prefetch = 0 : i64, scratch_operands = 3 : i64, tpu.core_type = #tpu.core_type<tc>, window_params = [{transform_indices = @transform_0, window_bounds = array<i64: 16, 128>}, {transform_indices = @transform_1, window_bounds = array<i64: 16, 128>}, {transform_indices = @transform_2, window_bounds = array<i64: 8, 128>}, {transform_indices = @transform_3, window_bounds = array<i64: 8, 128>}, {transform_indices = @transform_4, window_bounds = array<i64: 8, 128>}]} {
    %c0_i32 = arith.constant 0 : i32
    %0 = arith.cmpi eq, %arg1, %c0_i32 : i32
    %1 = arith.extui %0 : i1 to i32
    %c0_i32_0 = arith.constant 0 : i32
    %2 = arith.cmpi ne, %1, %c0_i32_0 : i32
    scf.if %2 {
      %cst_20 = arith.constant 0.000000e+00 : f32
      %25 = vector.broadcast %cst_20 : f32 to vector<8x128xf32>
      %c0_21 = arith.constant 0 : index
      %c0_22 = arith.constant 0 : index
      %26 = vector.load %arg7[%c0_21, %c0_22] : memref<8x128xf32, #tpu.memory_space<vmem>>, vector<8x128xf32>
      tpu.vector_store %arg7[%c0_21, %c0_22], %25 {strides = array<i32>} : memref<8x128xf32, #tpu.memory_space<vmem>>, vector<8x128xf32>,
      %cst_23 = arith.constant 0.000000e+00 : f32
      %27 = vector.broadcast %cst_23 : f32 to vector<8x128xf32>
      %c0_24 = arith.constant 0 : index
      %c0_25 = arith.constant 0 : index
      %28 = vector.load %arg8[%c0_24, %c0_25] : memref<8x128xf32, #tpu.memory_space<vmem>>, vector<8x128xf32>
      tpu.vector_store %arg8[%c0_24, %c0_25], %27 {strides = array<i32>} : memref<8x128xf32, #tpu.memory_space<vmem>>, vector<8x128xf32>,
      %cst_26 = arith.constant 0.000000e+00 : f32
      %29 = vector.broadcast %cst_26 : f32 to vector<8x128xf32>
      %c0_27 = arith.constant 0 : index
      %c0_28 = arith.constant 0 : index
      %30 = vector.load %arg9[%c0_27, %c0_28] : memref<8x128xf32, #tpu.memory_space<vmem>>, vector<8x128xf32>
      tpu.vector_store %arg9[%c0_27, %c0_28], %29 {strides = array<i32>} : memref<8x128xf32, #tpu.memory_space<vmem>>, vector<8x128xf32>,
    } else {
    }
    %c0 = arith.constant 0 : index
    %c0_1 = arith.constant 0 : index
    %3 = vector.load %arg2[%c0, %c0_1] : memref<16x128xf32, #tpu.memory_space<vmem>>, vector<16x128xf32>
    %c0_2 = arith.constant 0 : index
    %c0_3 = arith.constant 0 : index
    %4 = vector.load %arg3[%c0_2, %c0_3] : memref<16x128xf32, #tpu.memory_space<vmem>>, vector<16x128xf32>
    %5 = vector.shape_cast %3 : vector<16x128xf32> to vector<2x8x128xf32>
    %6 = vector.shape_cast %4 : vector<16x128xf32> to vector<2x8x128xf32>
    %c0_4 = arith.constant 0 : index
    %c0_5 = arith.constant 0 : index
    %7 = vector.load %arg7[%c0_4, %c0_5] : memref<8x128xf32, #tpu.memory_space<vmem>>, vector<8x128xf32>
    %8 = arith.mulf %5, %6 : vector<2x8x128xf32>
    %cst = arith.constant dense<0.000000e+00> : vector<8x128xf32>
    %9 = vector.multi_reduction <add>, %8, %cst [0] : vector<2x8x128xf32> to vector<8x128xf32>
    %10 = arith.addf %7, %9 : vector<8x128xf32>
    %c0_6 = arith.constant 0 : index
    %c0_7 = arith.constant 0 : index
    %11 = vector.load %arg7[%c0_6, %c0_7] : memref<8x128xf32, #tpu.memory_space<vmem>>, vector<8x128xf32>
    tpu.vector_store %arg7[%c0_6, %c0_7], %10 {strides = array<i32>} : memref<8x128xf32, #tpu.memory_space<vmem>>, vector<8x128xf32>,
    %c0_8 = arith.constant 0 : index
    %c0_9 = arith.constant 0 : index
    %12 = vector.load %arg8[%c0_8, %c0_9] : memref<8x128xf32, #tpu.memory_space<vmem>>, vector<8x128xf32>
    %13 = arith.mulf %5, %5 : vector<2x8x128xf32>
    %cst_10 = arith.constant dense<0.000000e+00> : vector<8x128xf32>
    %14 = vector.multi_reduction <add>, %13, %cst_10 [0] : vector<2x8x128xf32> to vector<8x128xf32>
    %15 = arith.addf %12, %14 : vector<8x128xf32>
    %c0_11 = arith.constant 0 : index
    %c0_12 = arith.constant 0 : index
    %16 = vector.load %arg8[%c0_11, %c0_12] : memref<8x128xf32, #tpu.memory_space<vmem>>, vector<8x128xf32>
    tpu.vector_store %arg8[%c0_11, %c0_12], %15 {strides = array<i32>} : memref<8x128xf32, #tpu.memory_space<vmem>>, vector<8x128xf32>,
    %c0_13 = arith.constant 0 : index
    %c0_14 = arith.constant 0 : index
    %17 = vector.load %arg9[%c0_13, %c0_14] : memref<8x128xf32, #tpu.memory_space<vmem>>, vector<8x128xf32>
    %18 = arith.mulf %6, %6 : vector<2x8x128xf32>
    %cst_15 = arith.constant dense<0.000000e+00> : vector<8x128xf32>
    %19 = vector.multi_reduction <add>, %18, %cst_15 [0] : vector<2x8x128xf32> to vector<8x128xf32>
    %20 = arith.addf %17, %19 : vector<8x128xf32>
    %c0_16 = arith.constant 0 : index
    %c0_17 = arith.constant 0 : index
    %21 = vector.load %arg9[%c0_16, %c0_17] : memref<8x128xf32, #tpu.memory_space<vmem>>, vector<8x128xf32>
    tpu.vector_store %arg9[%c0_16, %c0_17], %20 {strides = array<i32>} : memref<8x128xf32, #tpu.memory_space<vmem>>, vector<8x128xf32>,
    %c0_i32_18 = arith.constant 0 : i32
    %22 = arith.cmpi eq, %arg1, %c0_i32_18 : i32
    %23 = arith.extui %22 : i1 to i32
    %c0_i32_19 = arith.constant 0 : i32
    %24 = arith.cmpi ne, %23, %c0_i32_19 : i32
    scf.if %24 {
      %c0_20 = arith.constant 0 : index
      %c0_21 = arith.constant 0 : index
      %25 = vector.load %arg7[%c0_20, %c0_21] : memref<8x128xf32, #tpu.memory_space<vmem>>, vector<8x128xf32>
      %c0_22 = arith.constant 0 : index
      %c0_23 = arith.constant 0 : index
      %26 = vector.load %arg4[%c0_22, %c0_23] : memref<8x128xf32, #tpu.memory_space<vmem>>, vector<8x128xf32>
      tpu.vector_store %arg4[%c0_22, %c0_23], %25 {strides = array<i32>} : memref<8x128xf32, #tpu.memory_space<vmem>>, vector<8x128xf32>,
      %c0_24 = arith.constant 0 : index
      %c0_25 = arith.constant 0 : index
      %27 = vector.load %arg8[%c0_24, %c0_25] : memref<8x128xf32, #tpu.memory_space<vmem>>, vector<8x128xf32>
      %c0_26 = arith.constant 0 : index
      %c0_27 = arith.constant 0 : index
      %28 = vector.load %arg5[%c0_26, %c0_27] : memref<8x128xf32, #tpu.memory_space<vmem>>, vector<8x128xf32>
      tpu.vector_store %arg5[%c0_26, %c0_27], %27 {strides = array<i32>} : memref<8x128xf32, #tpu.memory_space<vmem>>, vector<8x128xf32>,
      %c0_28 = arith.constant 0 : index
      %c0_29 = arith.constant 0 : index
      %29 = vector.load %arg9[%c0_28, %c0_29] : memref<8x128xf32, #tpu.memory_space<vmem>>, vector<8x128xf32>
      %c0_30 = arith.constant 0 : index
      %c0_31 = arith.constant 0 : index
      %30 = vector.load %arg6[%c0_30, %c0_31] : memref<8x128xf32, #tpu.memory_space<vmem>>, vector<8x128xf32>
      tpu.vector_store %arg6[%c0_30, %c0_31], %29 {strides = array<i32>} : memref<8x128xf32, #tpu.memory_space<vmem>>, vector<8x128xf32>,
    } else {
    }
    return
  }
  func.func @transform_0(%arg0: i32, %arg1: i32) -> (i32, i32) {
    %c1_i32 = arith.constant 1 : i32
    %0 = arith.muli %arg0, %c1_i32 : i32
    %1 = arith.addi %0, %arg1 : i32
    %c0_i32 = arith.constant 0 : i32
    %2 = arith.minsi %1, %c0_i32 : i32
    %c0_i32_0 = arith.constant 0 : i32
    %c0_i32_1 = arith.constant 0 : i32
    return %2, %c0_i32_0 : i32, i32
  }
  func.func @transform_1(%arg0: i32, %arg1: i32) -> (i32, i32) {
    %c1_i32 = arith.constant 1 : i32
    %0 = arith.muli %arg0, %c1_i32 : i32
    %1 = arith.addi %0, %arg1 : i32
    %c0_i32 = arith.constant 0 : i32
    %2 = arith.minsi %1, %c0_i32 : i32
    %c0_i32_0 = arith.constant 0 : i32
    %c0_i32_1 = arith.constant 0 : i32
    return %2, %c0_i32_0 : i32, i32
  }
  func.func @transform_2(%arg0: i32, %arg1: i32) -> (i32, i32) {
    %c0_i32 = arith.constant 0 : i32
    %c0_i32_0 = arith.constant 0 : i32
    return %arg0, %c0_i32 : i32, i32
  }
  func.func @transform_3(%arg0: i32, %arg1: i32) -> (i32, i32) {
    %c0_i32 = arith.constant 0 : i32
    %c0_i32_0 = arith.constant 0 : i32
    return %arg0, %c0_i32 : i32, i32
  }
  func.func @transform_4(%arg0: i32, %arg1: i32) -> (i32, i32) {
    %c0_i32 = arith.constant 0 : i32
    %c0_i32_0 = arith.constant 0 : i32
    return %arg0, %c0_i32 : i32, i32
  }
}

</mosaic_0001>

<llo_original>
// kernel: dice_loss.1
$region0: #{dice_loss.1}
  #allocation0 [shape = 'u32[]', space=smem, size = 0x4, offset = 0x4, fixed_abs, tag = 'smem constant byte address 0x4 - core index']
  #allocation1 [shape = 'u32[144,128]{1,0:T(1,128)}', space=vmem, size = 0x12000, scoped, tag = 'internal scratch']
  #allocation2 [shape = 'f32[8,128]{1,0:T(8,128)}', space=vmem, size = 0x1000, scoped, tag = 'scratch operand']
  #allocation3 [shape = 'f32[8,128]{1,0:T(8,128)}', space=vmem, size = 0x1000, scoped, tag = 'scratch operand']
  #allocation4 [shape = 'f32[8,128]{1,0:T(8,128)}', space=vmem, size = 0x1000, scoped, tag = 'scratch operand']
  %s0 = inlined_call_operand.vmem [shape: f32[16,128], index: 0, kind: input, shape index: {}]
  %s1 = inlined_call_operand.vmem [shape: f32[16,128], index: 1, kind: input, shape index: {}]
  %s2 = inlined_call_operand.vmem [shape: f32[8,128], index: 2, kind: output, shape index: {0}]
  %s3 = inlined_call_operand.vmem [shape: f32[8,128], index: 3, kind: output, shape index: {1}]
  %s4 = inlined_call_operand.vmem [shape: f32[8,128], index: 4, kind: output, shape index: {2}]
  %5 = xla_tuple %s2, %s3, %s4
  %s6 = sld [smem:[#allocation0]]
  $region42: #{dice_loss.1} parent=0
    _
  %s8 = ssub.s32 1, %s6
  %s9 = scalar_select 0, %s8, %s6
  // Predicated region
  $region2: #{dice_loss.1} parent=0 // pred_check
    _
  $region3: #{dice_loss.1} parent=0 // pred_check_branch
    %11 = sbr.rel (0) target = $region5
  $region4: #{dice_loss.1} parent=0 // pred_region
    %s12 = sadd.s32 0, 0
    %p13 = scmp.lt.s32.totalorder %s12, 0
    %s14 = scalar_select %p13, %s12, 0
    %s15 = smul.u32 2, %s14
    %p16 = scmp.lt.s32.totalorder %s15, 1
    %s17 = scalar_select %p16, %s15, 1
    %s18 = smul.addr %s17, 8
    %s19 = scalar_lea.vmem %s0, %s18
    %s20 = sadd.s32 0, 0
    %p21 = scmp.lt.s32.totalorder %s20, 0
    %s22 = scalar_select %p21, %s20, 0
    %s23 = smul.u32 2, %s22
  $region5: #{dice_loss.1} parent=0 // pred_fallthru
    _
  // Predicated region
  $region6: #{dice_loss.1} parent=0 // pred_check
    _
  $region7: #{dice_loss.1} parent=0 // pred_check_branch
    %25 = sbr.rel (0) target = $region9
  $region8: #{dice_loss.1} parent=0 // pred_region
    %s26 = sadd.s32 0, 0
    %p27 = scmp.lt.s32.totalorder %s26, 0
    %s28 = scalar_select %p27, %s26, 0
    %s29 = smul.u32 2, %s28
    %p30 = scmp.lt.s32.totalorder %s29, 1
    %s31 = scalar_select %p30, %s29, 1
    %s32 = smul.addr %s31, 8
    %s33 = scalar_lea.vmem %s1, %s32
    %s34 = sadd.s32 0, 0
    %p35 = scmp.lt.s32.totalorder %s34, 0
    %s36 = scalar_select %p35, %s34, 0
    %s37 = smul.u32 2, %s36
  $region9: #{dice_loss.1} parent=0 // pred_fallthru
    _
  %s38 = sadd.s32 0, 0
  %p39 = scmp.lt.s32.totalorder %s38, 0
  %s40 = scalar_select %p39, %s38, 0
  %s41 = smul.u32 2, %s40
  %p42 = scmp.lt.s32.totalorder %s41, 1
  %s43 = scalar_select %p42, %s41, 1
  %s44 = smul.addr %s43, 8
  %s45 = scalar_lea.vmem %s0, %s44
  %s46 = sadd.s32 0, 0
  %p47 = scmp.lt.s32.totalorder %s46, 0
  %s48 = scalar_select %p47, %s46, 0
  %s49 = smul.u32 2, %s48
  %p50 = scmp.lt.s32.totalorder %s49, 1
  %s51 = scalar_select %p50, %s49, 1
  %s52 = smul.addr %s51, 8
  %s53 = scalar_lea.vmem %s1, %s52
  %s54 = sadd.s32 0, 0
  %p55 = scmp.lt.s32.totalorder %s54, 0
  %s56 = scalar_select %p55, %s54, 0
  %s57 = smul.u32 2, %s56
  %p58 = scmp.lt.s32.totalorder %s57, 1
  %s59 = scalar_select %p58, %s57, 1
  %s60 = smul.addr %s59, 8
  %s61 = scalar_lea.vmem %s0, %s60
  %s62 = sadd.s32 0, 0
  %p63 = scmp.lt.s32.totalorder %s62, 0
  %s64 = scalar_select %p63, %s62, 0
  %s65 = smul.u32 2, %s64
  %s66 = sadd.s32 0, 0
  %p67 = scmp.lt.s32.totalorder %s66, 0
  %s68 = scalar_select %p67, %s66, 0
  %s69 = smul.u32 2, %s68
  %p70 = scmp.lt.s32.totalorder %s69, 1
  %s71 = scalar_select %p70, %s69, 1
  %s72 = smul.addr %s71, 8
  %s73 = scalar_lea.vmem %s1, %s72
  %s74 = sadd.s32 0, 0
  %p75 = scmp.lt.s32.totalorder %s74, 0
  %s76 = scalar_select %p75, %s74, 0
  %s77 = smul.u32 2, %s76
  %p78 = scmp.eq.s32.totalorder 0, 0
  // Predicated region
  $region10: #{dice_loss.1} parent=0 // pred_check
    %p79 = pneg %p78
  $region11: #{dice_loss.1} parent=0 // pred_check_branch
    %81 = sbr.rel (%p79) target = $region13
  $region12: #{dice_loss.1} parent=0 // pred_region
    %82 = vst [vmem:[#allocation2] sm:$0xff] 0.0
    %83 = vst [vmem:[#allocation3] sm:$0xff] 0.0
    %84 = vst [vmem:[#allocation4] sm:$0xff] 0.0
  $region13: #{dice_loss.1} parent=0 // pred_fallthru
    _
  %v85 = vld [vmem:[%s61] sm:$0xff]
  %v86 = vld [vmem:[%s61 + $0x8] sm:$0xff]
  %v87 = vld [vmem:[%s73] sm:$0xff]
  %v88 = vld [vmem:[%s73 + $0x8] sm:$0xff]
  %v89 = vld [vmem:[#allocation2] sm:$0xff]
  %v90 = vmul.f32 %v85, %v87
  %v91 = vmul.f32 %v86, %v88
  %v92 = vadd.f32 %v90, %v91
  %v93 = vadd.f32 %v89, %v92
  %94 = vst [vmem:[#allocation2] sm:$0xff] %v93
  %v95 = vld [vmem:[#allocation3] sm:$0xff]
  %v96 = vmul.f32 %v85, %v85
  %v97 = vmul.f32 %v86, %v86
  %v98 = vadd.f32 %v96, %v97
  %v99 = vadd.f32 %v95, %v98
  %100 = vst [vmem:[#allocation3] sm:$0xff] %v99
  %v101 = vld [vmem:[#allocation4] sm:$0xff]
  %v102 = vmul.f32 %v87, %v87
  %v103 = vmul.f32 %v88, %v88
  %v104 = vadd.f32 %v102, %v103
  %v105 = vadd.f32 %v101, %v104
  %106 = vst [vmem:[#allocation4] sm:$0xff] %v105
  // Predicated region
  $region14: #{dice_loss.1} parent=0 // pred_check
    %p107 = pneg %p78
  $region15: #{dice_loss.1} parent=0 // pred_check_branch
    %109 = sbr.rel (%p107) target = $region17
  $region16: #{dice_loss.1} parent=0 // pred_region
    %v110 = vld [vmem:[#allocation2] sm:$0xff]
    %111 = vst [vmem:[%s2] sm:$0xff] %v110
    %v112 = vld [vmem:[#allocation3] sm:$0xff]
    %113 = vst [vmem:[%s3] sm:$0xff] %v112
    %v114 = vld [vmem:[#allocation4] sm:$0xff]
    %115 = vst [vmem:[%s4] sm:$0xff] %v114
  $region17: #{dice_loss.1} parent=0 // pred_fallthru
    _
  // Predicated region
  $region18: #{dice_loss.1} parent=0 // pred_check
    _
  $region19: #{dice_loss.1} parent=0 // pred_check_branch
    %117 = sbr.rel (0) target = $region21
  $region20: #{dice_loss.1} parent=0 // pred_region
    _
  $region21: #{dice_loss.1} parent=0 // pred_fallthru
    _
  // Predicated region
  $region22: #{dice_loss.1} parent=0 // pred_check
    _
  $region23: #{dice_loss.1} parent=0 // pred_check_branch
    %119 = sbr.rel (0) target = $region25
  $region24: #{dice_loss.1} parent=0 // pred_region
    _
  $region25: #{dice_loss.1} parent=0 // pred_fallthru
    _
  // Predicated region
  $region26: #{dice_loss.1} parent=0 // pred_check
    _
  $region27: #{dice_loss.1} parent=0 // pred_check_branch
    %121 = sbr.rel (0) target = $region29
  $region28: #{dice_loss.1} parent=0 // pred_region
    _
  $region29: #{dice_loss.1} parent=0 // pred_fallthru
    _
  // Predicated region
  $region30: #{dice_loss.1} parent=0 // pred_check
    _
  $region31: #{dice_loss.1} parent=0 // pred_check_branch
    %123 = sbr.rel (0) target = $region33
  $region32: #{dice_loss.1} parent=0 // pred_region
    _
  $region33: #{dice_loss.1} parent=0 // pred_fallthru
    _
  // Predicated region
  $region34: #{dice_loss.1} parent=0 // pred_check
    _
  $region35: #{dice_loss.1} parent=0 // pred_check_branch
    %125 = sbr.rel (0) target = $region37
  $region36: #{dice_loss.1} parent=0 // pred_region
    _
  $region37: #{dice_loss.1} parent=0 // pred_fallthru
    _
  // Predicated region
  $region38: #{dice_loss.1} parent=0 // pred_check
    _
  $region39: #{dice_loss.1} parent=0 // pred_check_branch
    %127 = sbr.rel (0) target = $region41
  $region40: #{dice_loss.1} parent=0 // pred_region
    _
  $region41: #{dice_loss.1} parent=0 // pred_fallthru
    _

</llo_original>
